<compile_context>
chip_gen: v6e
topology: v6e:2x2x1
jax: 0.10.0
libtpu: 0.0.40
codegen_flags: <defaults>
</compile_context>

<pallas_src>
import jax
import jax.numpy as jnp
from jax.experimental import pallas as pl
from jax.experimental.pallas import tpu as pltpu


def lora_kernel(x_ref, wt_ref, ax_ref, b_ref, bias_ref, o_ref):
    """One (batch, row-tile) grid step.  All reads are whole blocks.

    x_ref    : (TM, D)     row tile of x                      (compute dtype)
    wt_ref   : (D, D)      W^T, grid-invariant, single-buffered (compute dtype)
    ax_ref   : (rank, D)   (alpha*A) @ x[b], precomputed in wrapper (compute dtype)
    b_ref    : (TM, rank)  row tile of B                      (compute dtype)
    bias_ref : (1, D)      bias, grid-invariant, single-buffered (f32)
    o_ref    : (TM, D)     output row tile                    (x.dtype)
    """
    # old_pass rows: x_rows @ W^T   (f32 accumulation on the MXU)
    old = jnp.dot(x_ref[...], wt_ref[...], preferred_element_type=jnp.float32)
    # new_pass rows: B_rows @ ((alpha*A) @ x)   (rank dim already contracted)
    new = jnp.dot(b_ref[...], ax_ref[...], preferred_element_type=jnp.float32)
    # f32 epilogue (bias add + sum), then store in the output dtype.
    o_ref[...] = (old + bias_ref[...] + new).astype(o_ref.dtype)


def _pick_tm(d, target=512):
    """Largest row-tile <= target that is a multiple of 16 and divides D; else D."""
    if d <= target:
        return d
    best = None
    for tm in range(16, target + 1, 16):
        if d % tm == 0:
            best = tm
    # TODO(synk): for awkward D with no multiple-of-16 divisor <= target this falls
    # back to one (D, D) tile; set vmem_limit_bytes accordingly if that overflows.
    return best if best is not None else d


def _invariant_spec(block_shape, index_map):
    """BlockSpec for a grid-invariant operand: single-buffer it when supported."""
    try:
        return pl.BlockSpec(block_shape, index_map, pipeline_mode=pl.Buffered(1))
    except TypeError:  # older JAX without pipeline_mode on BlockSpec
        return pl.BlockSpec(block_shape, index_map)


def custom_lora_forward(x, w, a, b_mat, bias, alpha, *, tm=None,
                        compute_dtype=jnp.bfloat16):
    """x: (batch, D, D); w: (D, D) PyTorch Linear layout (out, in); a: (rank, D);
    b_mat: (D, rank); bias: (D,).  compute_dtype: MXU operand dtype (accumulation
    and epilogue stay f32)."""
    batch, d, d2 = x.shape
    assert d == d2, "forward only type-checks for square trailing dims"
    assert w.shape == (d, d), "forward only type-checks when in == out features"
    rank = a.shape[0]
    assert a.shape == (rank, d) and b_mat.shape == (d, rank)

    if tm is None:
        tm = _pick_tm(d)
    assert d % tm == 0 and (tm == d or tm % 16 == 0)
    n_row_tiles = d // tm

    # One-time XLA-side prep (grid-invariant or per-batch, trivially cheap):
    #  * fold alpha into A and contract the rank dim against x ONCE per batch:
    #      ax[b] = (alpha * A) @ x[b]    -> (batch, rank, D)
    #  * pre-transpose W so the old-pass matmul is a plain (TM,D)@(D,D)
    #  * cast MXU operands to compute_dtype; bias / epilogue stay f32.
    a_scaled = (a.astype(jnp.float32) * alpha)
    ax = jnp.einsum("rk,bkj->brj", a_scaled, x.astype(jnp.float32))
    x_c = x.astype(compute_dtype)
    wt_c = w.T.astype(compute_dtype)
    ax_c = ax.astype(compute_dtype)
    b_c = b_mat.astype(compute_dtype)
    bias2d = bias.reshape(1, d).astype(jnp.float32)

    in_item = jnp.dtype(compute_dtype).itemsize
    out_item = jnp.dtype(x.dtype).itemsize
    flops = 2 * batch * d * d * d + 2 * batch * d * rank * d
    bytes_accessed = (
        (batch * d * d + d * d + batch * rank * d + d * rank) * in_item
        + d * 4                       # f32 bias
        + batch * d * d * out_item)   # output write

    return pl.pallas_call(
        lora_kernel,
        out_shape=jax.ShapeDtypeStruct((batch, d, d), x.dtype),
        grid_spec=pltpu.PrefetchScalarGridSpec(
            num_scalar_prefetch=0,
            grid=(batch, n_row_tiles),
            in_specs=[
                # x row tile: streamed per (b, r) step.
                pl.BlockSpec((pl.Squeezed(), tm, d), lambda b, r: (b, r, 0)),
                # W^T: full, grid-invariant, single-buffered.
                _invariant_spec((d, d), lambda b, r: (0, 0)),
                # (alpha*A) @ x[b]: per-batch, resident across row tiles.
                pl.BlockSpec((pl.Squeezed(), rank, d), lambda b, r: (b, 0, 0)),
                # B row tile (slice expressed in the BlockSpec, not in-kernel).
                pl.BlockSpec((tm, rank), lambda b, r: (r, 0)),
                # bias: full, grid-invariant, single-buffered, f32.
                _invariant_spec((1, d), lambda b, r: (0, 0)),
            ],
            out_specs=pl.BlockSpec((pl.Squeezed(), tm, d), lambda b, r: (b, r, 0)),
        ),
        compiler_params=pltpu.CompilerParams(
            dimension_semantics=("parallel", "parallel")),
        cost_estimate=pl.CostEstimate(
            flops=flops, transcendentals=0, bytes_accessed=bytes_accessed),
    )(x_c, wt_c, ax_c, b_c, bias2d)


def ref_forward(x, w, a, b_mat, bias, alpha):
    """Pure-JAX fp32 reference mirroring the PyTorch forward exactly."""
    old = jnp.einsum("bij,oj->bio", x, w) + bias        # Linear over last dim
    ba = b_mat @ a                                      # (D_out, D_in)
    new = alpha * jnp.einsum("oi,bij->boj", ba, x)      # left matmul (broadcast batch)
    return old + new


if __name__ == "__main__":
    batch, d, rank, alpha = 2, 32, 4, 2

    key = jax.random.PRNGKey(0)
    kx, kw, kb, ka, kB = jax.random.split(key, 5)

    x = jax.random.normal(kx, (batch, d, d), dtype=jnp.float32)

    # old_linear params (nn.Linear(d, d)): weight (out, in), bias (out,)
    w = jax.random.normal(kw, (d, d), dtype=jnp.float32) * (1.0 / jnp.sqrt(d))
    bias = jax.random.normal(kb, (d,), dtype=jnp.float32) * 0.1

    # LoRA params: A ~ randn(rank, in) / sqrt(rank); B is (out, rank).
    # (PyTorch initializes B to zeros; small random values exercise the LoRA branch.)
    a = jax.random.normal(ka, (rank, d), dtype=jnp.float32) * (1.0 / jnp.sqrt(rank))
    b_mat = jax.random.normal(kB, (d, rank), dtype=jnp.float32) * 0.05

    ref = ref_forward(x, w, a, b_mat, bias, alpha)

    # fp32 path: matches the module's numerics up to the B@(A@x) reassociation (~1e-6 rel).
    out_f32 = jax.block_until_ready(
        custom_lora_forward(x, w, a, b_mat, bias, alpha, compute_dtype=jnp.float32))
    assert out_f32.shape == (batch, d, d)
    assert jnp.allclose(out_f32, ref, atol=1e-4, rtol=1e-4), "fp32 mismatch vs reference"

    # bf16-MXU path (default): bf16 operands, f32 accumulation/epilogue; looser tolerance.
    out_bf16 = jax.block_until_ready(
        custom_lora_forward(x, w, a, b_mat, bias, alpha))
    assert out_bf16.shape == (batch, d, d)
    assert jnp.allclose(out_bf16, ref, atol=7.5e-2, rtol=5e-2), "bf16 mismatch vs reference"

    print("KERNEL_OK")
</pallas_src>

<mosaic_0001>
module attributes {stable_mosaic.version = 11 : i64} {
  func.func @lora_kernel(%arg0: i32, %arg1: i32, %arg2: memref<1x32x32xf32, #tpu.memory_space<vmem>>, %arg3: memref<32x32xf32, #tpu.memory_space<vmem>>, %arg4: memref<1x4x32xf32, #tpu.memory_space<vmem>>, %arg5: memref<32x4xf32, #tpu.memory_space<vmem>>, %arg6: memref<1x32xf32, #tpu.memory_space<vmem>>, %arg7: memref<1x32x32xf32, #tpu.memory_space<vmem>>) attributes {dimension_semantics = [#tpu.dimension_semantics<parallel>, #tpu.dimension_semantics<parallel>], iteration_bounds = array<i64: 2, 1>, scalar_prefetch = 0 : i64, scratch_operands = 0 : i64, tpu.core_type = #tpu.core_type<tc>, window_params = [{transform_indices = @transform_0, window_bounds = array<i64: 1, 32, 32>}, {pipeline_mode = #tpu.pipeline_mode<synchronous>, transform_indices = @transform_1, window_bounds = array<i64: 32, 32>}, {transform_indices = @transform_2, window_bounds = array<i64: 1, 4, 32>}, {transform_indices = @transform_3, window_bounds = array<i64: 32, 4>}, {pipeline_mode = #tpu.pipeline_mode<synchronous>, transform_indices = @transform_4, window_bounds = array<i64: 1, 32>}, {transform_indices = @transform_5, window_bounds = array<i64: 1, 32, 32>}]} {
    %c0 = arith.constant 0 : index
    %c0_0 = arith.constant 0 : index
    %c0_1 = arith.constant 0 : index
    %0 = vector.load %arg2[%c0, %c0_0, %c0_1] : memref<1x32x32xf32, #tpu.memory_space<vmem>>, vector<1x32x32xf32>
    %1 = vector.shape_cast %0 : vector<1x32x32xf32> to vector<32x32xf32>
    %c0_2 = arith.constant 0 : index
    %c0_3 = arith.constant 0 : index
    %2 = vector.load %arg3[%c0_2, %c0_3] : memref<32x32xf32, #tpu.memory_space<vmem>>, vector<32x32xf32>
    %cst = arith.constant dense<0.000000e+00> : vector<32x32xf32>
    %3 = tpu.matmul %1, %2, %cst {dimension_numbers = #tpu.dot_dimension_numbers<[1], [0], [0], [1], [0, 0, 1, 1], [], []>} : vector<32x32xf32>, vector<32x32xf32>, vector<32x32xf32> -> vector<32x32xf32>
    %c0_4 = arith.constant 0 : index
    %c0_5 = arith.constant 0 : index
    %4 = vector.load %arg5[%c0_4, %c0_5] : memref<32x4xf32, #tpu.memory_space<vmem>>, vector<32x4xf32>
    %c0_6 = arith.constant 0 : index
    %c0_7 = arith.constant 0 : index
    %c0_8 = arith.constant 0 : index
    %5 = vector.load %arg4[%c0_6, %c0_7, %c0_8] : memref<1x4x32xf32, #tpu.memory_space<vmem>>, vector<1x4x32xf32>
    %6 = vector.shape_cast %5 : vector<1x4x32xf32> to vector<4x32xf32>
    %cst_9 = arith.constant dense<0.000000e+00> : vector<32x32xf32>
    %7 = tpu.matmul %4, %6, %cst_9 {dimension_numbers = #tpu.dot_dimension_numbers<[1], [0], [0], [1], [0, 0, 1, 1], [], []>} : vector<32x4xf32>, vector<4x32xf32>, vector<32x32xf32> -> vector<32x32xf32>
    %c0_10 = arith.constant 0 : index
    %c0_11 = arith.constant 0 : index
    %8 = vector.load %arg6[%c0_10, %c0_11] : memref<1x32xf32, #tpu.memory_space<vmem>>, vector<1x32xf32>
    %9 = vector.broadcast %8 : vector<1x32xf32> to vector<32x32xf32>
    %10 = arith.addf %3, %9 : vector<32x32xf32>
    %11 = arith.addf %10, %7 : vector<32x32xf32>
    %c0_12 = arith.constant 0 : index
    %c0_13 = arith.constant 0 : index
    %c0_14 = arith.constant 0 : index
    %12 = vector.load %arg7[%c0_12, %c0_13, %c0_14] : memref<1x32x32xf32, #tpu.memory_space<vmem>>, vector<1x32x32xf32>
    %13 = vector.shape_cast %12 : vector<1x32x32xf32> to vector<32x32xf32>
    %14 = vector.shape_cast %11 : vector<32x32xf32> to vector<1x32x32xf32>
    tpu.vector_store %arg7[%c0_12, %c0_13, %c0_14], %14 {strides = array<i32>} : memref<1x32x32xf32, #tpu.memory_space<vmem>>, vector<1x32x32xf32>,
    return
  }
  func.func @transform_0(%arg0: i32, %arg1: i32) -> (i32, i32, i32) {
    %c0_i32 = arith.constant 0 : i32
    %c0_i32_0 = arith.constant 0 : i32
    return %arg0, %arg1, %c0_i32 : i32, i32, i32
  }
  func.func @transform_1(%arg0: i32, %arg1: i32) -> (i32, i32) {
    %c0_i32 = arith.constant 0 : i32
    %c0_i32_0 = arith.constant 0 : i32
    %c0_i32_1 = arith.constant 0 : i32
    return %c0_i32, %c0_i32_0 : i32, i32
  }
  func.func @transform_2(%arg0: i32, %arg1: i32) -> (i32, i32, i32) {
    %c0_i32 = arith.constant 0 : i32
    %c0_i32_0 = arith.constant 0 : i32
    %c0_i32_1 = arith.constant 0 : i32
    return %arg0, %c0_i32, %c0_i32_0 : i32, i32, i32
  }
  func.func @transform_3(%arg0: i32, %arg1: i32) -> (i32, i32) {
    %c0_i32 = arith.constant 0 : i32
    %c0_i32_0 = arith.constant 0 : i32
    return %arg1, %c0_i32 : i32, i32
  }
  func.func @transform_4(%arg0: i32, %arg1: i32) -> (i32, i32) {
    %c0_i32 = arith.constant 0 : i32
    %c0_i32_0 = arith.constant 0 : i32
    %c0_i32_1 = arith.constant 0 : i32
    return %c0_i32, %c0_i32_0 : i32, i32
  }
  func.func @transform_5(%arg0: i32, %arg1: i32) -> (i32, i32, i32) {
    %c0_i32 = arith.constant 0 : i32
    %c0_i32_0 = arith.constant 0 : i32
    return %arg0, %arg1, %c0_i32 : i32, i32, i32
  }
}

</mosaic_0001>

<llo_original>
// kernel: tpu_custom_call.1
$region0: #{tpu_custom_call.1}
  #allocation0 [shape = 'u32[]', space=smem, size = 0x4, offset = 0x4, fixed_abs, tag = 'smem constant byte address 0x4 - core index']
  #allocation1 [shape = 'u32[144,128]{1,0:T(1,128)}', space=vmem, size = 0x12000, scoped, tag = 'internal scratch']
  %s0 = inlined_call_operand.hbm [shape: f32[2,32,32], index: 0, kind: input, shape index: {}]
  %s1 = inlined_call_operand.vmem [shape: f32[32,32], index: 1, kind: input, shape index: {}]
  %s2 = inlined_call_operand.hbm [shape: f32[2,4,32], index: 2, kind: input, shape index: {}]
  %s3 = inlined_call_operand.vmem [shape: f32[32,4], index: 3, kind: input, shape index: {}]
  %s4 = inlined_call_operand.vmem [shape: f32[1,32], index: 4, kind: input, shape index: {}]
  %s5 = inlined_call_operand.hbm [shape: f32[2,32,32], index: 5, kind: output, shape index: {}]
  %s6 = sld [smem:[#allocation0]]
  $region61: #{tpu_custom_call.1} parent=0
    _
  %s8 = ssub.s32 1, %s6
  %s9 = scalar_select 0, %s8, %s6
  $region1: #{tpu_custom_call.1} parent=0
    #allocation2 [shape = 'u8[32768]{0}', space=vmem, size = 0x8000, scoped, tag = 'input window, operand 0']
    #allocation3 [shape = 's32[2]{0}', space=sflag, size = 0x8, scoped, tag = 'scoped memory for tpu_custom_call.1']
    #allocation4 [shape = 's32[2]{0}', space=sflag, size = 0x8, scoped, tag = 'scoped memory for tpu_custom_call.1']
    #allocation5 [shape = 'u8[4096]{0}', space=vmem, size = 0x1000, scoped, tag = 'input window, operand 2']
    #allocation6 [shape = 's32[2]{0}', space=sflag, size = 0x8, scoped, tag = 'scoped memory for tpu_custom_call.1']
    #allocation7 [shape = 'u8[32768]{0}', space=vmem, size = 0x8000, scoped, tag = 'output window, operand 0']
    %10 = vsyncpa [#allocation3], 0
    %s11 = scalar_lea.sflag [#allocation3], 1
    %12 = vsyncpa %s11, 0
    %13 = vsyncpa [#allocation6], 0
    %s14 = scalar_lea.sflag [#allocation6], 1
    %15 = vsyncpa %s14, 0
    %16 = vsyncpa [#allocation4], 0
    %s17 = scalar_lea.sflag [#allocation4], 1
    %18 = vsyncpa %s17, 0
    loop: start=0, step=1, limit=4
    $region2: #{tpu_custom_call.1} parent=1 // loop_pre_header
      _
    $region3: #{tpu_custom_call.1} parent=1 // loop_header
      %s20 = sphi 0, %s24
      %p21 = scmp.ge.s32.totalorder %s20, 4
      %s27 = sphi 0, %s39
      %s28 = sphi 0, %s35
      %s29 = sphi 0, %s27
      %s30 = sphi 0, %s28
      %s31 = sphi 0, %s29
      %s32 = sphi 0, %s30
      %s44 = sphi 0, %s46
      %s47 = sphi 0, %s44
      %s48 = sphi 0, %s47
      %s64 = sphi 0, %s48
      %s68 = sphi 0, %s68
      %s70 = sphi 0, %s68
      %s71 = sphi 0, %s70
      %s85 = sphi 0, %s71
      %s91 = sphi 0, %s93
      %s94 = sphi 0, %s91
      %s95 = sphi 0, %s94
      %s111 = sphi 0, %s95
      %s117 = sphi 0, %s119
      %s120 = sphi 0, %s117
      %s121 = sphi 0, %s120
      %s137 = sphi 0, %s121
      %s141 = sphi 0, %s141
      %s143 = sphi 0, %s141
      %s144 = sphi 0, %s143
      %s158 = sphi 0, %s144
      %s166 = sphi 0, %s168
      %s169 = sphi 0, %s166
      %s170 = sphi 0, %s169
      %s186 = sphi 0, %s170
    $region4: #{tpu_custom_call.1} parent=1 // loop_header_branch
      %23 = sbr.rel (%p21) target = $region8
    $region5: #{tpu_custom_call.1} parent=1 // loop_body
      %s25 = ssub.s32 %s20, 1
      %s26 = ssub.s32 %s20, 2
      %s33 = sadd.s32 1, %s28
      %p34 = scmp.ge.s32.totalorder %s33, 1
      %s35 = scalar_select %p34, 0, %s33
      %s36 = sadd.s32 1, %s27
      %s37 = scalar_select %p34, %s36, %s27
      %p38 = scmp.ge.s32.totalorder %s37, 2
      %s39 = scalar_select %p38, 0, %s37
      %s40 = ssub.s32 %s27, %s39
      %s41 = ssub.s32 %s28, %s35
      %s42 = sor.u32 %s40, %s41
      %p43 = scmp.eq.s32.totalorder %s42, 0
      %s45 = sadd.s32 %s44, 1
      %s46 = scalar_select %p43, %s44, %s45
      %p49 = pneg %p43
      %p50 = scmp.eq.s32.totalorder %s20, 1
      %p51 = por %p49, %p50
      %p52 = scmp.ne.s32.totalorder %s44, %s47
      %p53 = scmp.eq.s32.totalorder %s20, 0
      %p54 = por %p52, %p53
      %p55 = scmp.ne.s32.totalorder %s44, %s47
      %p56 = scmp.eq.s32.totalorder %s25, 1
      %p57 = por %p55, %p56
      %p58 = scmp.ne.s32.totalorder %s47, %s48
      %p59 = scmp.eq.s32.totalorder %s25, 0
      %p60 = por %p58, %p59
      %p61 = scmp.ne.s32.totalorder %s47, %s48
      %p62 = scmp.eq.s32.totalorder %s26, 1
      %p63 = por %p61, %p62
      %p65 = scmp.ne.s32.totalorder %s48, %s64
      %p66 = scmp.eq.s32.totalorder %s26, 0
      %p67 = por %p65, %p66
      %s69 = sadd.s32 %s68, 1
      %p72 = scmp.eq.s32.totalorder %s20, 1
      %p73 = scmp.ne.s32.totalorder %s68, %s70
      %p74 = scmp.eq.s32.totalorder %s20, 0
      %p75 = por %p73, %p74
      %p76 = scmp.ne.s32.totalorder %s68, %s70
      %p77 = scmp.eq.s32.totalorder %s25, 1
      %p78 = por %p76, %p77
      %p79 = scmp.ne.s32.totalorder %s70, %s71
      %p80 = scmp.eq.s32.totalorder %s25, 0
      %p81 = por %p79, %p80
      %p82 = scmp.ne.s32.totalorder %s70, %s71
      %p83 = scmp.eq.s32.totalorder %s26, 1
      %p84 = por %p82, %p83
      %p86 = scmp.ne.s32.totalorder %s71, %s85
      %p87 = scmp.eq.s32.totalorder %s26, 0
      %p88 = por %p86, %p87
      %s89 = ssub.s32 %s27, %s39
      %p90 = scmp.eq.s32.totalorder %s89, 0
      %s92 = sadd.s32 %s91, 1
      %s93 = scalar_select %p90, %s91, %s92
      %p96 = pneg %p90
      %p97 = scmp.eq.s32.totalorder %s20, 1
      %p98 = por %p96, %p97
      %p99 = scmp.ne.s32.totalorder %s91, %s94
      %p100 = scmp.eq.s32.totalorder %s20, 0
      %p101 = por %p99, %p100
      %p102 = scmp.ne.s32.totalorder %s91, %s94
      %p103 = scmp.eq.s32.totalorder %s25, 1
      %p104 = por %p102, %p103
      %p105 = scmp.ne.s32.totalorder %s94, %s95
      %p106 = scmp.eq.s32.totalorder %s25, 0
      %p107 = por %p105, %p106
      %p108 = scmp.ne.s32.totalorder %s94, %s95
      %p109 = scmp.eq.s32.totalorder %s26, 1
      %p110 = por %p108, %p109
      %p112 = scmp.ne.s32.totalorder %s95, %s111
      %p113 = scmp.eq.s32.totalorder %s26, 0
      %p114 = por %p112, %p113
      %s115 = ssub.s32 %s28, %s35
      %p116 = scmp.eq.s32.totalorder %s115, 0
      %s118 = sadd.s32 %s117, 1
      %s119 = scalar_select %p116, %s117, %s118
      %p122 = pneg %p116
      %p123 = scmp.eq.s32.totalorder %s20, 1
      %p124 = por %p122, %p123
      %p125 = scmp.ne.s32.totalorder %s117, %s120
      %p126 = scmp.eq.s32.totalorder %s20, 0
      %p127 = por %p125, %p126
      %p128 = scmp.ne.s32.totalorder %s117, %s120
      %p129 = scmp.eq.s32.totalorder %s25, 1
      %p130 = por %p128, %p129
      %p131 = scmp.ne.s32.totalorder %s120, %s121
      %p132 = scmp.eq.s32.totalorder %s25, 0
      %p133 = por %p131, %p132
      %p134 = scmp.ne.s32.totalorder %s120, %s121
      %p135 = scmp.eq.s32.totalorder %s26, 1
      %p136 = por %p134, %p135
      %p138 = scmp.ne.s32.totalorder %s121, %s137
      %p139 = scmp.eq.s32.totalorder %s26, 0
      %p140 = por %p138, %p139
      %s142 = sadd.s32 %s141, 1
      %p145 = scmp.eq.s32.totalorder %s20, 1
      %p146 = scmp.ne.s32.totalorder %s141, %s143
      %p147 = scmp.eq.s32.totalorder %s20, 0
      %p148 = por %p146, %p147
      %p149 = scmp.ne.s32.totalorder %s141, %s143
      %p150 = scmp.eq.s32.totalorder %s25, 1
      %p151 = por %p149, %p150
      %p152 = scmp.ne.s32.totalorder %s143, %s144
      %p153 = scmp.eq.s32.totalorder %s25, 0
      %p154 = por %p152, %p153
      %p155 = scmp.ne.s32.totalorder %s143, %s144
      %p156 = scmp.eq.s32.totalorder %s26, 1
      %p157 = por %p155, %p156
      %p159 = scmp.ne.s32.totalorder %s144, %s158
      %p160 = scmp.eq.s32.totalorder %s26, 0
      %p161 = por %p159, %p160
      %s162 = ssub.s32 %s27, %s39
      %s163 = ssub.s32 %s28, %s35
      %s164 = sor.u32 %s162, %s163
      %p165 = scmp.eq.s32.totalorder %s164, 0
      %s167 = sadd.s32 %s166, 1
      %s168 = scalar_select %p165, %s166, %s167
      %p171 = pneg %p165
      %p172 = scmp.eq.s32.totalorder %s20, 1
      %p173 = por %p171, %p172
      %p174 = scmp.ne.s32.totalorder %s166, %s169
      %p175 = scmp.eq.s32.totalorder %s20, 0
      %p176 = por %p174, %p175
      %p177 = scmp.ne.s32.totalorder %s166, %s169
      %p178 = scmp.eq.s32.totalorder %s25, 1
      %p179 = por %p177, %p178
      %p180 = scmp.ne.s32.totalorder %s169, %s170
      %p181 = scmp.eq.s32.totalorder %s25, 0
      %p182 = por %p180, %p181
      %p183 = scmp.ne.s32.totalorder %s169, %s170
      %p184 = scmp.eq.s32.totalorder %s26, 1
      %p185 = por %p183, %p184
      %p187 = scmp.ne.s32.totalorder %s170, %s186
      %p188 = scmp.eq.s32.totalorder %s26, 0
      %p189 = por %p187, %p188
      %p190 = scmp.le.s32.totalorder 1, %s20
      %p191 = scmp.lt.s32.totalorder %s20, 3
      %p192 = pnand %p190, %p191
      %p193 = pneg %p192
      // Predicated region
      $region9: #{tpu_custom_call.1} parent=5 // pred_check
        _
      $region10: #{tpu_custom_call.1} parent=5 // pred_check_branch
        %195 = sbr.rel (%p192) target = $region12
      $region11: #{tpu_custom_call.1} parent=5 // pred_region
        %s196 = ssub.s32 %s20, 1
        // Predicated region
        $region13: #{tpu_custom_call.1} parent=11 // pred_check
          %p197 = pneg %p81
        $region14: #{tpu_custom_call.1} parent=11 // pred_check_branch
          %199 = sbr.rel (%p197) target = $region16
        $region15: #{tpu_custom_call.1} parent=11 // pred_region
          _
        $region16: #{tpu_custom_call.1} parent=11 // pred_fallthru
          _
        // Predicated region
        $region17: #{tpu_custom_call.1} parent=11 // pred_check
          %p200 = pneg %p133
        $region18: #{tpu_custom_call.1} parent=11 // pred_check_branch
          %202 = sbr.rel (%p200) target = $region20
        $region19: #{tpu_custom_call.1} parent=11 // pred_region
          %s203 = smul.u32 4, %s30
          %p204 = scmp.lt.s32.totalorder %s203, 3
          %s205 = scalar_select %p204, %s203, 3
          %s206 = smul.addr %s205, 8
          %s207 = scalar_lea.vmem %s3, %s206
          %s208 = smul.u32 4, %s30
        $region20: #{tpu_custom_call.1} parent=11 // pred_fallthru
          _
        // Predicated region
        $region21: #{tpu_custom_call.1} parent=11 // pred_check
          %p209 = pneg %p154
        $region22: #{tpu_custom_call.1} parent=11 // pred_check_branch
          %211 = sbr.rel (%p209) target = $region24
        $region23: #{tpu_custom_call.1} parent=11 // pred_region
          _
        $region24: #{tpu_custom_call.1} parent=11 // pred_fallthru
          _
      $region12: #{tpu_custom_call.1} parent=5 // pred_fallthru
        _
      %p212 = scmp.lt.s32.totalorder %s20, 2
      // Predicated region
      $region25: #{tpu_custom_call.1} parent=5 // pred_check
        %p213 = pneg %p212
      $region26: #{tpu_custom_call.1} parent=5 // pred_check_branch
        %215 = sbr.rel (%p213) target = $region28
      $region27: #{tpu_custom_call.1} parent=5 // pred_region
        // Predicated region
        $region29: #{tpu_custom_call.1} parent=27 // pred_check
          %p216 = pneg %p54
        $region30: #{tpu_custom_call.1} parent=27 // pred_check_branch
          %218 = sbr.rel (%p216) target = $region32
        $region31: #{tpu_custom_call.1} parent=27 // pred_region
          %s219 = sand.u32 %s44, 1
          %s220 = scalar_lea.sflag [#allocation3], %s219
          %s221 = sand.u32 %s44, 1
          %s222 = smul.addr %s221, 32
          %s223 = scalar_lea.vmem [#allocation2], %s222
          %s224 = smul.u32 4, %s28
          %s226 = ssub.s32 512, 512
          %227 = vsyncadd %s220, %s226
          %s228 = smul.addr %s27, 4
          %s229 = sadd.s32 %s224, %s228
          %s230 = smul.addr %s229, 128
          %s231 = scalar_lea.hbm %s0, %s230
          %s232 = sshll.u32 %s223, 4
          %s233 = int_to_ptr.vmem [resolvable:$true] %s232
          %238 = dma.hbm_to_vmem [thread:$0]  %s231, 512, %s233, %s220, 128, 128, 8
        $region32: #{tpu_custom_call.1} parent=27 // pred_fallthru
          _
        // Predicated region
        $region33: #{tpu_custom_call.1} parent=27 // pred_check
          %p239 = pneg %p101
        $region34: #{tpu_custom_call.1} parent=27 // pred_check_branch
          %241 = sbr.rel (%p239) target = $region36
        $region35: #{tpu_custom_call.1} parent=27 // pred_region
          %s242 = sand.u32 %s91, 1
          %s243 = scalar_lea.sflag [#allocation6], %s242
          %s244 = sand.u32 %s91, 1
          %s245 = smul.addr %s244, 4
          %s246 = scalar_lea.vmem [#allocation5], %s245
          %s248 = ssub.s32 64, 64
          %249 = vsyncadd %s243, %s248
          %s250 = smul.addr %s27, 64
          %s251 = scalar_lea.hbm %s2, %s250
          %s253 = sshll.u32 %s246, 4
          %s254 = int_to_ptr.vmem [resolvable:$true] %s253
          %256 = dma.hbm_to_vmem [thread:$0]  %s251, 64, %s254, %s243
        $region36: #{tpu_custom_call.1} parent=27 // pred_fallthru
          _
      $region28: #{tpu_custom_call.1} parent=5 // pred_fallthru
        _
      %p257 = scmp.le.s32.totalorder 1, %s20
      %p258 = scmp.lt.s32.totalorder %s20, 3
      %p259 = pnand %p257, %p258
      %p260 = pneg %p259
      // Predicated region
      $region37: #{tpu_custom_call.1} parent=5 // pred_check
        _
      $region38: #{tpu_custom_call.1} parent=5 // pred_check_branch
        %262 = sbr.rel (%p259) target = $region40
      $region39: #{tpu_custom_call.1} parent=5 // pred_region
        %s263 = ssub.s32 %s20, 1
        %s264 = sand.u32 %s47, 1
        %s265 = scalar_lea.sflag [#allocation3], %s264
        %s266 = sand.u32 %s47, 1
        %s267 = smul.addr %s266, 32
        %s268 = scalar_lea.vmem [#allocation2], %s267
        // Predicated region
        $region41: #{tpu_custom_call.1} parent=39 // pred_check
          %p269 = pneg %p60
        $region42: #{tpu_custom_call.1} parent=39 // pred_check_branch
          %271 = sbr.rel (%p269) target = $region44
        $region43: #{tpu_custom_call.1} parent=39 // pred_region
          %272 = dma.done %s265, 512
        $region44: #{tpu_custom_call.1} parent=39 // pred_fallthru
          _
        %s273 = sand.u32 %s94, 1
        %s274 = scalar_lea.sflag [#allocation6], %s273
        %s275 = sand.u32 %s94, 1
        %s276 = smul.addr %s275, 4
        %s277 = scalar_lea.vmem [#allocation5], %s276
        // Predicated region
        $region45: #{tpu_custom_call.1} parent=39 // pred_check
          %p278 = pneg %p107
        $region46: #{tpu_custom_call.1} parent=39 // pred_check_branch
          %280 = sbr.rel (%p278) target = $region48
        $region47: #{tpu_custom_call.1} parent=39 // pred_region
          %281 = dma.done %s274, 64
        $region48: #{tpu_custom_call.1} parent=39 // pred_fallthru
          _
        %s282 = sand.u32 %s47, 1
        %s283 = scalar_lea.sflag [#allocation3], %s282
        %s284 = sand.u32 %s47, 1
        %s285 = smul.addr %s284, 32
        %s286 = scalar_lea.vmem [#allocation2], %s285
        %p287 = pneg %p60
        %p288 = pneg %p57
        %p289 = pneg %p81
        %p290 = pneg %p78
        %s291 = sand.u32 %s94, 1
        %s292 = scalar_lea.sflag [#allocation6], %s291
        %s293 = sand.u32 %s94, 1
        %s294 = smul.addr %s293, 4
        %s295 = scalar_lea.vmem [#allocation5], %s294
        %p296 = pneg %p107
        %p297 = pneg %p104
        %s298 = smul.u32 4, %s30
        %p299 = scmp.lt.s32.totalorder %s298, 3
        %s300 = scalar_select %p299, %s298, 3
        %s301 = smul.addr %s300, 8
        %s302 = scalar_lea.vmem %s3, %s301
        %p303 = pneg %p133
        %p304 = pneg %p130
        %p305 = pneg %p154
        %p306 = pneg %p151
        %p307 = pneg %p182
        %p308 = pneg %p179
        %s309 = sand.u32 %s169, 1
        %s310 = scalar_lea.sflag [#allocation4], %s309
        %s311 = sand.u32 %s169, 1
        %s312 = smul.addr %s311, 32
        %s313 = scalar_lea.vmem [#allocation7], %s312
        %s314 = smul.u32 4, %s30
        %s315 = smul.u32 4, %s30
        %p316 = scmp.lt.s32.totalorder %s315, 3
        %s317 = scalar_select %p316, %s315, 3
        %s318 = smul.addr %s317, 8
        %s319 = scalar_lea.vmem %s3, %s318
        %s320 = smul.u32 4, %s30
        %s321 = smul.u32 4, %s30
        %v322 = vld [vmem:[%s268] sm:$0xff]
        %v323 = vld [vmem:[%s268 + $0x8] sm:$0xff]
        %v324 = vld [vmem:[%s268 + $0x10] sm:$0xff]
        %v325 = vld [vmem:[%s268 + $0x18] sm:$0xff]
        %v326 = vld [vmem:[%s1] sm:$0xff]
        %v327 = vld [vmem:[%s1 + $0x8] sm:$0xff]
        %v328 = vld [vmem:[%s1 + $0x10] sm:$0xff]
        %v329 = vld [vmem:[%s1 + $0x18] sm:$0xff]
        %v330 = vld [vmem:[%s319] sm:$0xff]
        %v331 = vld [vmem:[%s319 + $0x8] sm:$0xff]
        %v332 = vld [vmem:[%s319 + $0x10] sm:$0xff]
        %v333 = vld [vmem:[%s319 + $0x18] sm:$0xff]
        %v334 = vld [vmem:[%s277] sm:$0xf]
        %vm335 = vcmask 31744
        %v337 = vsel %vm335, %v330, 0
        %v340 = vsel %vm335, %v331, 0
        %v343 = vsel %vm335, %v332, 0
        %v346 = vsel %vm335, %v333, 0
        %vm348 = vcmask 1043456
        %v350 = vsel %vm348, %v334, 0
        %352 = vmatprep.subr.mxu0 0.0
        %353 = vmatpush1.msra.mxu0 0.0
        %354 = vmatprep.subr.mxu0 0.0
        %355 = vmatpush1.msra.mxu0 0.0
        %356 = vmatprep.subr.mxu0 0.0
        %357 = vmatpush1.msra.mxu0 0.0
        %358 = vmatprep.subr.mxu0 0.0
        %359 = vmatpush1.msra.mxu0 0.0
        %360 = vmatprep.subr.mxu0 0.0
        %361 = vmatpush1.msra.mxu0 0.0
        %362 = vmatprep.subr.mxu0 0.0
        %363 = vmatpush1.msra.mxu0 0.0
        %364 = vmatprep.subr.mxu0 0.0
        %365 = vmatpush1.msra.mxu0 0.0
        %366 = vmatprep.subr.mxu0 0.0
        %367 = vmatpush1.msra.mxu0 0.0
        %368 = vmatprep.subr.mxu0 0.0
        %369 = vmatpush1.msra.mxu0 0.0
        %370 = vmatprep.subr.mxu0 0.0
        %371 = vmatpush1.msra.mxu0 0.0
        %372 = vmatprep.subr.mxu0 0.0
        %373 = vmatpush1.msra.mxu0 0.0
        %374 = vmatprep.subr.mxu0 0.0
        %375 = vmatpush1.msra.mxu0 0.0
        %376 = vmatprep.subr.mxu0 0.0
        %377 = vmatpush1.msra.mxu0 0.0
        %378 = vmatprep.subr.mxu0 0.0
        %379 = vmatpush1.msra.mxu0 0.0
        %380 = vmatprep.subr.mxu0 0.0
        %381 = vmatpush1.msra.mxu0 0.0
        %382 = vmatprep.subr.mxu0 0.0
        %383 = vmatpush1.msra.mxu0 %v350
        %384 = vmatprep.subr.mxu0 0.0
        %385 = vmatpush2.msra.mxu0 0.0
        %386 = vmatprep.subr.mxu0 0.0
        %387 = vmatpush2.msra.mxu0 0.0
        %388 = vmatprep.subr.mxu0 0.0
        %389 = vmatpush2.msra.mxu0 0.0
        %390 = vmatprep.subr.mxu0 0.0
        %391 = vmatpush2.msra.mxu0 0.0
        %392 = vmatprep.subr.mxu0 0.0
        %393 = vmatpush2.msra.mxu0 0.0
        %394 = vmatprep.subr.mxu0 0.0
        %395 = vmatpush2.msra.mxu0 0.0
        %396 = vmatprep.subr.mxu0 0.0
        %397 = vmatpush2.msra.mxu0 0.0
        %398 = vmatprep.subr.mxu0 0.0
        %399 = vmatpush2.msra.mxu0 0.0
        %400 = vmatprep.subr.mxu0 0.0
        %401 = vmatpush2.msra.mxu0 0.0
        %402 = vmatprep.subr.mxu0 0.0
        %403 = vmatpush2.msra.mxu0 0.0
        %404 = vmatprep.subr.mxu0 0.0
        %405 = vmatpush2.msra.mxu0 0.0
        %406 = vmatprep.subr.mxu0 0.0
        %407 = vmatpush2.msra.mxu0 0.0
        %408 = vmatprep.subr.mxu0 0.0
        %409 = vmatpush2.msra.mxu0 0.0
        %410 = vmatprep.subr.mxu0 0.0
        %411 = vmatpush2.msra.mxu0 0.0
        %412 = vmatprep.subr.mxu0 0.0
        %413 = vmatpush2.msra.mxu0 0.0
        %414 = vmatprep.subr.mxu0 0.0
        %415 = vmatpush2.msra.mxu0 0.0
        %416 = vmatprep.mubr.f32.mxu0 0.0
        %417 = vmatmul.mubr.f32.gmra.mxu0 %v337
        %v418 = vpop.f32.mrf.mxu0
        %v419 = vadd.f32 0.0, %v418
        %v420 = vpop.f32.mrf.mxu0
        %421 = vmatprep.mubr.f32.mxu0 0.0
        %422 = vmatmul.mubr.f32.gmra.mxu0 %v340
        %v423 = vpop.f32.mrf.mxu0
        %v424 = vadd.f32 0.0, %v423
        %v425 = vpop.f32.mrf.mxu0
        %426 = vmatprep.mubr.f32.mxu0 0.0
        %427 = vmatmul.mubr.f32.gmra.mxu0 %v343
        %v428 = vpop.f32.mrf.mxu0
        %v429 = vadd.f32 0.0, %v428
        %v430 = vpop.f32.mrf.mxu0
        %431 = vmatprep.mubr.f32.mxu0 0.0
        %432 = vmatmul.mubr.f32.gmra.mxu0 %v346
        %v433 = vpop.f32.mrf.mxu0
        %v434 = vadd.f32 0.0, %v433
        %v435 = vpop.f32.mrf.mxu0
        %436 = vdwg.mxu0
        %v437 = vld [vmem:[%s4] sm:$0x1]
        %v439 = vlaneseq
        %v440 = vshrl.u32 %v439, 7
        %v441 = vsub.s32 0, %v440
        %v442 = vrot.slane %v437, %v441
        %vm444 = vcmask 261120
        %v446 = vsel %vm444, %v322, 0
        %v449 = vsel %vm444, %v323, 0
        %v452 = vsel %vm444, %v324, 0
        %v455 = vsel %vm444, %v325, 0
        %457 = vmatprep.subr.mxu0 0.0
        %458 = vmatpush1.msra.mxu0 0.0
        %459 = vmatprep.subr.mxu0 0.0
        %460 = vmatpush1.msra.mxu0 0.0
        %461 = vmatprep.subr.mxu0 0.0
        %462 = vmatpush1.msra.mxu0 0.0
        %463 = vmatprep.subr.mxu0 0.0
        %464 = vmatpush1.msra.mxu0 0.0
        %465 = vmatprep.subr.mxu0 0.0
        %466 = vmatpush1.msra.mxu0 0.0
        %467 = vmatprep.subr.mxu0 0.0
        %468 = vmatpush1.msra.mxu0 0.0
        %469 = vmatprep.subr.mxu0 0.0
        %470 = vmatpush1.msra.mxu0 0.0
        %471 = vmatprep.subr.mxu0 0.0
        %472 = vmatpush1.msra.mxu0 0.0
        %473 = vmatprep.subr.mxu0 0.0
        %474 = vmatpush1.msra.mxu0 0.0
        %475 = vmatprep.subr.mxu0 0.0
        %476 = vmatpush1.msra.mxu0 0.0
        %477 = vmatprep.subr.mxu0 0.0
        %478 = vmatpush1.msra.mxu0 0.0
        %479 = vmatprep.subr.mxu0 0.0
        %480 = vmatpush1.msra.mxu0 0.0
        %481 = vmatprep.subr.mxu0 0.0
        %482 = vmatpush1.msra.mxu0 %v329
        %483 = vmatprep.subr.mxu0 0.0
        %484 = vmatpush1.msra.mxu0 %v328
        %485 = vmatprep.subr.mxu0 0.0
        %486 = vmatpush1.msra.mxu0 %v327
        %487 = vmatprep.subr.mxu0 0.0
        %488 = vmatpush1.msra.mxu0 %v326
        %489 = vmatprep.subr.mxu0 0.0
        %490 = vmatpush2.msra.mxu0 0.0
        %491 = vmatprep.subr.mxu0 0.0
        %492 = vmatpush2.msra.mxu0 0.0
        %493 = vmatprep.subr.mxu0 0.0
        %494 = vmatpush2.msra.mxu0 0.0
        %495 = vmatprep.subr.mxu0 0.0
        %496 = vmatpush2.msra.mxu0 0.0
        %497 = vmatprep.subr.mxu0 0.0
        %498 = vmatpush2.msra.mxu0 0.0
        %499 = vmatprep.subr.mxu0 0.0
        %500 = vmatpush2.msra.mxu0 0.0
        %501 = vmatprep.subr.mxu0 0.0
        %502 = vmatpush2.msra.mxu0 0.0
        %503 = vmatprep.subr.mxu0 0.0
        %504 = vmatpush2.msra.mxu0 0.0
        %505 = vmatprep.subr.mxu0 0.0
        %506 = vmatpush2.msra.mxu0 0.0
        %507 = vmatprep.subr.mxu0 0.0
        %508 = vmatpush2.msra.mxu0 0.0
        %509 = vmatprep.subr.mxu0 0.0
        %510 = vmatpush2.msra.mxu0 0.0
        %511 = vmatprep.subr.mxu0 0.0
        %512 = vmatpush2.msra.mxu0 0.0
        %513 = vmatprep.subr.mxu0 0.0
        %514 = vmatpush2.msra.mxu0 0.0
        %515 = vmatprep.subr.mxu0 0.0
        %516 = vmatpush2.msra.mxu0 0.0
        %517 = vmatprep.subr.mxu0 0.0
        %518 = vmatpush2.msra.mxu0 0.0
        %519 = vmatprep.subr.mxu0 0.0
        %520 = vmatpush2.msra.mxu0 0.0
        %521 = vmatprep.mubr.f32.mxu0 0.0
        %522 = vmatmul.mubr.f32.gmra.mxu0 %v446
        %v523 = vpop.f32.mrf.mxu0
        %v524 = vadd.f32 %v442, %v523
        %v525 = vpop.f32.mrf.mxu0
        %526 = vmatprep.mubr.f32.mxu0 0.0
        %527 = vmatmul.mubr.f32.gmra.mxu0 %v449
        %v528 = vpop.f32.mrf.mxu0
        %v529 = vadd.f32 %v442, %v528
        %v530 = vpop.f32.mrf.mxu0
        %531 = vmatprep.mubr.f32.mxu0 0.0
        %532 = vmatmul.mubr.f32.gmra.mxu0 %v452
        %v533 = vpop.f32.mrf.mxu0
        %v534 = vadd.f32 %v442, %v533
        %v535 = vpop.f32.mrf.mxu0
        %536 = vmatprep.mubr.f32.mxu0 0.0
        %537 = vmatmul.mubr.f32.gmra.mxu0 %v455
        %v538 = vpop.f32.mrf.mxu0
        %v539 = vadd.f32 %v442, %v538
        %v540 = vpop.f32.mrf.mxu0
        %541 = vdwg.mxu0
        %v542 = vadd.f32 %v524, %v419
        %v543 = vadd.f32 %v529, %v424
        %v544 = vadd.f32 %v534, %v429
        %v545 = vadd.f32 %v539, %v434
        %546 = vst.msk [vmem:[%s313] sm:$0xff] %vm444, %v542
        %547 = vst.msk [vmem:[%s313 + $0x8] sm:$0xff] %vm444, %v543
        %548 = vst.msk [vmem:[%s313 + $0x10] sm:$0xff] %vm444, %v544
        %549 = vst.msk [vmem:[%s313 + $0x18] sm:$0xff] %vm444, %v545
        %s550 = sand.u32 %s169, 1
        %s551 = scalar_lea.sflag [#allocation4], %s550
        %s552 = sand.u32 %s169, 1
        %s553 = smul.addr %s552, 32
        %s554 = scalar_lea.vmem [#allocation7], %s553
        // Predicated region
        $region49: #{tpu_custom_call.1} parent=39 // pred_check
          %p555 = pneg %p179
        $region50: #{tpu_custom_call.1} parent=39 // pred_check_branch
          %557 = sbr.rel (%p555) target = $region52
        $region51: #{tpu_custom_call.1} parent=39 // pred_region
          %s558 = smul.u32 4, %s30
          %s560 = ssub.s32 512, 512
          %561 = vsyncadd %s551, %s560
          %s562 = smul.addr %s29, 4
          %s563 = sadd.s32 %s558, %s562
          %s564 = smul.addr %s563, 128
          %s565 = scalar_lea.hbm %s5, %s564
          %s566 = sshll.u32 %s554, 4
          %s567 = int_to_ptr.vmem [resolvable:$true] %s566
          %572 = dma.vmem_to_hbm [thread:$0]  %s567, 512, %s565, %s551, 128, 128, 8
        $region52: #{tpu_custom_call.1} parent=39 // pred_fallthru
          _
      $region40: #{tpu_custom_call.1} parent=5 // pred_fallthru
        _
      %p573 = scmp.le.s32.totalorder 2, %s20
      // Predicated region
      $region53: #{tpu_custom_call.1} parent=5 // pred_check
        %p574 = pneg %p573
      $region54: #{tpu_custom_call.1} parent=5 // pred_check_branch
        %576 = sbr.rel (%p574) target = $region56
      $region55: #{tpu_custom_call.1} parent=5 // pred_region
        %s577 = ssub.s32 %s20, 2
        // Predicated region
        $region57: #{tpu_custom_call.1} parent=55 // pred_check
          %p578 = pneg %p185
        $region58: #{tpu_custom_call.1} parent=55 // pred_check_branch
          %580 = sbr.rel (%p578) target = $region60
        $region59: #{tpu_custom_call.1} parent=55 // pred_region
          %s581 = sand.u32 %s170, 1
          %s582 = scalar_lea.sflag [#allocation4], %s581
          %s583 = sand.u32 %s170, 1
          %s584 = smul.addr %s583, 32
          %s585 = scalar_lea.vmem [#allocation7], %s584
          %586 = dma.done %s582, 512
        $region60: #{tpu_custom_call.1} parent=55 // pred_fallthru
          _
      $region56: #{tpu_custom_call.1} parent=5 // pred_fallthru
        _
    $region6: #{tpu_custom_call.1} parent=1 // loop_footer
      %s24 = sadd.s32 1, %s20
    $region7: #{tpu_custom_call.1} parent=1 // loop_footer_branch
      %19 = sbr.rel target = $region3
    $region8: #{tpu_custom_call.1} parent=1 // loop_exit
      _
    %587 = vsyncpa [#allocation3], 1
    %s588 = scalar_lea.sflag [#allocation3], 1
    %589 = vsyncpa %s588, 1
    %590 = vsyncpa [#allocation6], 1
    %s591 = scalar_lea.sflag [#allocation6], 1
    %592 = vsyncpa %s591, 1
    %593 = vsyncpa [#allocation4], 1
    %s594 = scalar_lea.sflag [#allocation4], 1
    %595 = vsyncpa %s594, 1

</llo_original>
